<compile_context>
chip_gen: v7x
topology: tpu7x:2x2x1
jax: 0.10.0
libtpu: 0.0.40
codegen_flags: <defaults>
</compile_context>

<pallas_src>
import functools

import jax
import jax.numpy as jnp
from jax.experimental import pallas as pl
from jax.experimental.pallas import tpu as pltpu


def _round_up(x, n):
    return ((x + n - 1) // n) * n


def embracenet_kernel(x_ref, w_ref, b_ref, avail_ref, sel_ref, u_ref, out_ref,
                      *, num_modalities):
    # ---- selection_probabilities = (selp * avail) / sum(...)  (safe denominator) ----
    probs = sel_ref[...] * avail_ref[...]                       # [tb, M] f32
    denom = jnp.sum(probs, axis=-1, keepdims=True)
    probs = probs / jnp.where(denom > 0.0, denom, 1.0)          # all-unavailable rows -> probs = 0

    # CDF lower bounds, hoisted out of the [tb, E]-wide loop (cheap [tb, 1] math only).
    lowers = []
    low = jnp.zeros_like(probs[:, 0:1])
    for m in range(num_modalities):
        lowers.append(low)
        low = low + probs[:, m:m + 1]

    u = u_ref[...]                                              # [tb, E] uniforms in [0, 1)

    # ---- docking (Linear + ReLU) and embracement (pick one modality per output slot) ----
    # Progressive overwrite: the selected modality for a slot is the largest m with u >= lowers[m];
    # the last bucket automatically absorbs fp rounding of the CDF.
    acc = None
    for m in range(num_modalities):
        d_m = jnp.dot(x_ref[m], w_ref[m],
                      preferred_element_type=jnp.float32) + b_ref[m]   # bf16 x bf16 -> f32 acc
        d_m = jnp.maximum(d_m, 0.0)
        if m == 0:
            acc = d_m                                           # u >= 0 always
        else:
            acc = jnp.where(u >= lowers[m], d_m, acc)           # 1 compare + 1 select per modality

    out_ref[...] = acc.astype(out_ref.dtype)


def embracenet_forward(input_list, weights, biases, availabilities=None,
                       selection_probabilities=None, key=None,
                       embracement_size=256, tb=256):
    """input_list[i]: [B, D_i]; weights[i]: [D_i, E]; biases[i]: [E]."""
    num_modalities = len(input_list)
    batch = input_list[0].shape[0]
    e = embracement_size

    if key is None:
        key = jax.random.PRNGKey(0)
    if availabilities is None:
        availabilities = jnp.ones((batch, num_modalities), dtype=jnp.float32)
    if selection_probabilities is None:
        selection_probabilities = jnp.ones((batch, num_modalities), dtype=jnp.float32)

    # One uniform per (row, embracement slot) -- drives the in-kernel multinomial sampling.
    u = jax.random.uniform(key, (batch, e), dtype=jnp.float32)

    # Batch tile: large for MXU row utilization / lane-dense DMAs, sublane-aligned, clamped to batch.
    tb = max(8, min(tb, _round_up(batch, 8)))
    tb = _round_up(tb, 8)
    b_pad = _round_up(batch, tb)                     # ragged batches handled by padding, not dropping

    # Lane-align the contraction dim; zero-padding x columns and the matching W rows keeps x@W exact.
    d_pad = _round_up(max(xi.shape[1] for xi in input_list), 128)

    x = jnp.stack(
        [jnp.pad(xi.astype(jnp.float32),
                 ((0, b_pad - batch), (0, d_pad - xi.shape[1])))
         for xi in input_list], axis=0).astype(jnp.bfloat16)                     # [M, Bp, Dp]
    w = jnp.stack(
        [jnp.pad(wi.astype(jnp.float32), ((0, d_pad - wi.shape[0]), (0, 0)))
         for wi in weights], axis=0).astype(jnp.bfloat16)                        # [M, Dp, E]
    b = jnp.stack([bi.astype(jnp.float32).reshape(1, e) for bi in biases], axis=0)  # [M, 1, E]

    # Padded rows: avail/selp filled with 1.0 so the probability normalization stays finite.
    avail = jnp.pad(availabilities.astype(jnp.float32),
                    ((0, b_pad - batch), (0, 0)), constant_values=1.0)           # [Bp, M]
    selp = jnp.pad(selection_probabilities.astype(jnp.float32),
                   ((0, b_pad - batch), (0, 0)), constant_values=1.0)            # [Bp, M]
    u = jnp.pad(u, ((0, b_pad - batch), (0, 0)))                                  # [Bp, E]

    kernel = functools.partial(embracenet_kernel, num_modalities=num_modalities)

    out = pl.pallas_call(
        kernel,
        out_shape=jax.ShapeDtypeStruct((b_pad, e), jnp.float32),
        grid=(b_pad // tb,),
        in_specs=[
            pl.BlockSpec((num_modalities, tb, d_pad), lambda i: (0, i, 0)),   # x
            pl.BlockSpec((num_modalities, d_pad, e), lambda i: (0, 0, 0)),    # W (resident)
            pl.BlockSpec((num_modalities, 1, e), lambda i: (0, 0, 0)),        # b (resident)
            pl.BlockSpec((tb, num_modalities), lambda i: (i, 0)),             # availabilities
            pl.BlockSpec((tb, num_modalities), lambda i: (i, 0)),             # selection probs
            pl.BlockSpec((tb, e), lambda i: (i, 0)),                          # uniforms
        ],
        out_specs=pl.BlockSpec((tb, e), lambda i: (i, 0)),
        compiler_params=pltpu.CompilerParams(
            dimension_semantics=("parallel",),        # batch tiles are independent -> megacore on v7x
            vmem_limit_bytes=64 * 1024 * 1024,
        ),
    )(x, w, b, avail, selp, u)

    return out[:batch]


if __name__ == "__main__":
    key = jax.random.PRNGKey(0)

    batch = 8
    input_size_list = [32, 48, 20]
    embracement_size = 256
    num_modalities = len(input_size_list)

    keys = jax.random.split(key, 3 * num_modalities + 2)

    # deterministic "nn.Linear"-style params: U(-1/sqrt(fan_in), 1/sqrt(fan_in))
    inputs, weights, biases = [], [], []
    for i, d in enumerate(input_size_list):
        bound = 1.0 / (d ** 0.5)
        inputs.append(jax.random.normal(keys[3 * i], (batch, d), dtype=jnp.float32))
        weights.append(jax.random.uniform(keys[3 * i + 1], (d, embracement_size),
                                          minval=-bound, maxval=bound, dtype=jnp.float32))
        biases.append(jax.random.uniform(keys[3 * i + 2], (embracement_size,),
                                         minval=-bound, maxval=bound, dtype=jnp.float32))

    availabilities = jnp.ones((batch, num_modalities), dtype=jnp.float32)
    selection_probabilities = jax.random.uniform(keys[-2], (batch, num_modalities),
                                                 minval=0.5, maxval=1.5, dtype=jnp.float32)

    out = embracenet_forward(inputs, weights, biases, availabilities,
                             selection_probabilities, key=keys[-1],
                             embracement_size=embracement_size)
    out = jax.block_until_ready(out)

    assert out.shape == (batch, embracement_size)
    assert bool(jnp.all(jnp.isfinite(out)))
    print("KERNEL_OK")
</pallas_src>

<mosaic_0001>
module attributes {stable_mosaic.version = 11 : i64} {
  func.func @embracenet_kernel(%arg0: i32, %arg1: memref<3x8x128xbf16, #tpu.memory_space<vmem>>, %arg2: memref<3x128x256xbf16, #tpu.memory_space<vmem>>, %arg3: memref<3x1x256xf32, #tpu.memory_space<vmem>>, %arg4: memref<8x3xf32, #tpu.memory_space<vmem>>, %arg5: memref<8x3xf32, #tpu.memory_space<vmem>>, %arg6: memref<8x256xf32, #tpu.memory_space<vmem>>, %arg7: memref<8x256xf32, #tpu.memory_space<vmem>>) attributes {dimension_semantics = [#tpu.dimension_semantics<parallel>], iteration_bounds = array<i64: 1>, scalar_prefetch = 0 : i64, scratch_operands = 0 : i64, tpu.core_type = #tpu.core_type<tc>, window_params = [{transform_indices = @transform_0, window_bounds = array<i64: 3, 8, 128>}, {pipeline_mode = #tpu.pipeline_mode<synchronous>, transform_indices = @transform_1, window_bounds = array<i64: 3, 128, 256>}, {pipeline_mode = #tpu.pipeline_mode<synchronous>, transform_indices = @transform_2, window_bounds = array<i64: 3, 1, 256>}, {transform_indices = @transform_3, window_bounds = array<i64: 8, 3>}, {transform_indices = @transform_4, window_bounds = array<i64: 8, 3>}, {transform_indices = @transform_5, window_bounds = array<i64: 8, 256>}, {transform_indices = @transform_6, window_bounds = array<i64: 8, 256>}]} {
    %c0 = arith.constant 0 : index
    %c0_0 = arith.constant 0 : index
    %0 = vector.load %arg5[%c0, %c0_0] : memref<8x3xf32, #tpu.memory_space<vmem>>, vector<8x3xf32>
    %c0_1 = arith.constant 0 : index
    %c0_2 = arith.constant 0 : index
    %1 = vector.load %arg4[%c0_1, %c0_2] : memref<8x3xf32, #tpu.memory_space<vmem>>, vector<8x3xf32>
    %2 = arith.mulf %0, %1 : vector<8x3xf32>
    %cst = arith.constant dense<0.000000e+00> : vector<8xf32>
    %3 = vector.multi_reduction <add>, %2, %cst [1] : vector<8x3xf32> to vector<8xf32>
    %4 = vector.shape_cast %3 : vector<8xf32> to vector<8x1xf32>
    %cst_3 = arith.constant 0.000000e+00 : f32
    %5 = vector.broadcast %cst_3 : f32 to vector<8x1xf32>
    %6 = arith.cmpf ogt, %4, %5 : vector<8x1xf32>
    %cst_4 = arith.constant 1.000000e+00 : f32
    %7 = vector.broadcast %cst_4 : f32 to vector<8x1xf32>
    %8 = arith.select %6, %4, %7 : vector<8x1xi1>, vector<8x1xf32>
    %9 = vector.broadcast %8 : vector<8x1xf32> to vector<8x3xf32>
    %10 = arith.divf %2, %9 : vector<8x3xf32>
    %cst_5 = arith.constant 0.000000e+00 : f32
    %11 = vector.broadcast %cst_5 : f32 to vector<8x1xf32>
    %12 = vector.extract_strided_slice %10 {offsets = [0, 0], sizes = [8, 1], strides = [1, 1]} : vector<8x3xf32> to vector<8x1xf32>
    %13 = arith.addf %11, %12 : vector<8x1xf32>
    %14 = vector.extract_strided_slice %10 {offsets = [0, 1], sizes = [8, 1], strides = [1, 1]} : vector<8x3xf32> to vector<8x1xf32>
    %15 = arith.addf %13, %14 : vector<8x1xf32>
    %c0_6 = arith.constant 0 : index
    %c0_7 = arith.constant 0 : index
    %16 = vector.load %arg6[%c0_6, %c0_7] : memref<8x256xf32, #tpu.memory_space<vmem>>, vector<8x256xf32>
    %c0_8 = arith.constant 0 : index
    %c0_9 = arith.constant 0 : index
    %c0_10 = arith.constant 0 : index
    %17 = vector.load %arg1[%c0_8, %c0_9, %c0_10] : memref<3x8x128xbf16, #tpu.memory_space<vmem>>, vector<1x8x128xbf16>
    %18 = vector.shape_cast %17 : vector<1x8x128xbf16> to vector<8x128xbf16>
    %c0_11 = arith.constant 0 : index
    %c0_12 = arith.constant 0 : index
    %c0_13 = arith.constant 0 : index
    %19 = vector.load %arg2[%c0_11, %c0_12, %c0_13] : memref<3x128x256xbf16, #tpu.memory_space<vmem>>, vector<1x128x256xbf16>
    %20 = vector.shape_cast %19 : vector<1x128x256xbf16> to vector<128x256xbf16>
    %cst_14 = arith.constant dense<0.000000e+00> : vector<8x256xf32>
    %21 = tpu.matmul %18, %20, %cst_14 {dimension_numbers = #tpu.dot_dimension_numbers<[1], [0], [0], [1], [0, 0, 1, 1], [], []>} : vector<8x128xbf16>, vector<128x256xbf16>, vector<8x256xf32> -> vector<8x256xf32>
    %c0_15 = arith.constant 0 : index
    %c0_16 = arith.constant 0 : index
    %c0_17 = arith.constant 0 : index
    %22 = vector.load %arg3[%c0_15, %c0_16, %c0_17] : memref<3x1x256xf32, #tpu.memory_space<vmem>>, vector<1x1x256xf32>
    %23 = vector.shape_cast %22 : vector<1x1x256xf32> to vector<1x256xf32>
    %24 = vector.broadcast %23 : vector<1x256xf32> to vector<8x256xf32>
    %25 = arith.addf %21, %24 : vector<8x256xf32>
    %cst_18 = arith.constant 0.000000e+00 : f32
    %26 = vector.broadcast %cst_18 : f32 to vector<8x256xf32>
    %27 = arith.maximumf %25, %26 : vector<8x256xf32>
    %c1 = arith.constant 1 : index
    %c0_19 = arith.constant 0 : index
    %c0_20 = arith.constant 0 : index
    %28 = vector.load %arg1[%c1, %c0_19, %c0_20] : memref<3x8x128xbf16, #tpu.memory_space<vmem>>, vector<1x8x128xbf16>
    %29 = vector.shape_cast %28 : vector<1x8x128xbf16> to vector<8x128xbf16>
    %c1_21 = arith.constant 1 : index
    %c0_22 = arith.constant 0 : index
    %c0_23 = arith.constant 0 : index
    %30 = vector.load %arg2[%c1_21, %c0_22, %c0_23] : memref<3x128x256xbf16, #tpu.memory_space<vmem>>, vector<1x128x256xbf16>
    %31 = vector.shape_cast %30 : vector<1x128x256xbf16> to vector<128x256xbf16>
    %cst_24 = arith.constant dense<0.000000e+00> : vector<8x256xf32>
    %32 = tpu.matmul %29, %31, %cst_24 {dimension_numbers = #tpu.dot_dimension_numbers<[1], [0], [0], [1], [0, 0, 1, 1], [], []>} : vector<8x128xbf16>, vector<128x256xbf16>, vector<8x256xf32> -> vector<8x256xf32>
    %c1_25 = arith.constant 1 : index
    %c0_26 = arith.constant 0 : index
    %c0_27 = arith.constant 0 : index
    %33 = vector.load %arg3[%c1_25, %c0_26, %c0_27] : memref<3x1x256xf32, #tpu.memory_space<vmem>>, vector<1x1x256xf32>
    %34 = vector.shape_cast %33 : vector<1x1x256xf32> to vector<1x256xf32>
    %35 = vector.broadcast %34 : vector<1x256xf32> to vector<8x256xf32>
    %36 = arith.addf %32, %35 : vector<8x256xf32>
    %cst_28 = arith.constant 0.000000e+00 : f32
    %37 = vector.broadcast %cst_28 : f32 to vector<8x256xf32>
    %38 = arith.maximumf %36, %37 : vector<8x256xf32>
    %39 = vector.broadcast %13 : vector<8x1xf32> to vector<8x256xf32>
    %40 = arith.cmpf oge, %16, %39 : vector<8x256xf32>
    %41 = arith.select %40, %38, %27 : vector<8x256xi1>, vector<8x256xf32>
    %c2 = arith.constant 2 : index
    %c0_29 = arith.constant 0 : index
    %c0_30 = arith.constant 0 : index
    %42 = vector.load %arg1[%c2, %c0_29, %c0_30] : memref<3x8x128xbf16, #tpu.memory_space<vmem>>, vector<1x8x128xbf16>
    %43 = vector.shape_cast %42 : vector<1x8x128xbf16> to vector<8x128xbf16>
    %c2_31 = arith.constant 2 : index
    %c0_32 = arith.constant 0 : index
    %c0_33 = arith.constant 0 : index
    %44 = vector.load %arg2[%c2_31, %c0_32, %c0_33] : memref<3x128x256xbf16, #tpu.memory_space<vmem>>, vector<1x128x256xbf16>
    %45 = vector.shape_cast %44 : vector<1x128x256xbf16> to vector<128x256xbf16>
    %cst_34 = arith.constant dense<0.000000e+00> : vector<8x256xf32>
    %46 = tpu.matmul %43, %45, %cst_34 {dimension_numbers = #tpu.dot_dimension_numbers<[1], [0], [0], [1], [0, 0, 1, 1], [], []>} : vector<8x128xbf16>, vector<128x256xbf16>, vector<8x256xf32> -> vector<8x256xf32>
    %c2_35 = arith.constant 2 : index
    %c0_36 = arith.constant 0 : index
    %c0_37 = arith.constant 0 : index
    %47 = vector.load %arg3[%c2_35, %c0_36, %c0_37] : memref<3x1x256xf32, #tpu.memory_space<vmem>>, vector<1x1x256xf32>
    %48 = vector.shape_cast %47 : vector<1x1x256xf32> to vector<1x256xf32>
    %49 = vector.broadcast %48 : vector<1x256xf32> to vector<8x256xf32>
    %50 = arith.addf %46, %49 : vector<8x256xf32>
    %cst_38 = arith.constant 0.000000e+00 : f32
    %51 = vector.broadcast %cst_38 : f32 to vector<8x256xf32>
    %52 = arith.maximumf %50, %51 : vector<8x256xf32>
    %53 = vector.broadcast %15 : vector<8x1xf32> to vector<8x256xf32>
    %54 = arith.cmpf oge, %16, %53 : vector<8x256xf32>
    %55 = arith.select %54, %52, %41 : vector<8x256xi1>, vector<8x256xf32>
    %c0_39 = arith.constant 0 : index
    %c0_40 = arith.constant 0 : index
    %56 = vector.load %arg7[%c0_39, %c0_40] : memref<8x256xf32, #tpu.memory_space<vmem>>, vector<8x256xf32>
    tpu.vector_store %arg7[%c0_39, %c0_40], %55 {strides = array<i32>} : memref<8x256xf32, #tpu.memory_space<vmem>>, vector<8x256xf32>,
    return
  }
  func.func @transform_0(%arg0: i32) -> (i32, i32, i32) {
    %c0_i32 = arith.constant 0 : i32
    %c0_i32_0 = arith.constant 0 : i32
    %c0_i32_1 = arith.constant 0 : i32
    return %c0_i32, %arg0, %c0_i32_0 : i32, i32, i32
  }
  func.func @transform_1(%arg0: i32) -> (i32, i32, i32) {
    %c0_i32 = arith.constant 0 : i32
    %c0_i32_0 = arith.constant 0 : i32
    %c0_i32_1 = arith.constant 0 : i32
    %c0_i32_2 = arith.constant 0 : i32
    return %c0_i32, %c0_i32_0, %c0_i32_1 : i32, i32, i32
  }
  func.func @transform_2(%arg0: i32) -> (i32, i32, i32) {
    %c0_i32 = arith.constant 0 : i32
    %c0_i32_0 = arith.constant 0 : i32
    %c0_i32_1 = arith.constant 0 : i32
    %c0_i32_2 = arith.constant 0 : i32
    return %c0_i32, %c0_i32_0, %c0_i32_1 : i32, i32, i32
  }
  func.func @transform_3(%arg0: i32) -> (i32, i32) {
    %c0_i32 = arith.constant 0 : i32
    %c0_i32_0 = arith.constant 0 : i32
    return %arg0, %c0_i32 : i32, i32
  }
  func.func @transform_4(%arg0: i32) -> (i32, i32) {
    %c0_i32 = arith.constant 0 : i32
    %c0_i32_0 = arith.constant 0 : i32
    return %arg0, %c0_i32 : i32, i32
  }
  func.func @transform_5(%arg0: i32) -> (i32, i32) {
    %c0_i32 = arith.constant 0 : i32
    %c0_i32_0 = arith.constant 0 : i32
    return %arg0, %c0_i32 : i32, i32
  }
  func.func @transform_6(%arg0: i32) -> (i32, i32) {
    %c0_i32 = arith.constant 0 : i32
    %c0_i32_0 = arith.constant 0 : i32
    return %arg0, %c0_i32 : i32, i32
  }
}

</mosaic_0001>

<llo_original>
// kernel: tpu_custom_call.1
$region0: #{tpu_custom_call.1}
  #allocation0 [shape = 'u32[]', space=smem, size = 0x4, offset = 0x4, fixed_abs, tag = 'smem constant byte address 0x4 - core index']
  #allocation1 [shape = 'u32[144,128]{1,0:T(1,128)}', space=vmem, size = 0x12000, scoped, tag = 'internal scratch']
  %s0 = inlined_call_operand.hbm [shape: bf16[3,8,128], index: 0, kind: input, shape index: {}]
  %s1 = inlined_call_operand.hbm [shape: bf16[3,128,256], index: 1, kind: input, shape index: {}]
  %s2 = inlined_call_operand.hbm [shape: f32[3,1,256], index: 2, kind: input, shape index: {}]
  %s3 = inlined_call_operand.hbm [shape: f32[8,3], index: 3, kind: input, shape index: {}]
  %s4 = inlined_call_operand.hbm [shape: f32[8,3], index: 4, kind: input, shape index: {}]
  %s5 = inlined_call_operand.hbm [shape: f32[8,256], index: 5, kind: input, shape index: {}]
  %s6 = inlined_call_operand.hbm [shape: f32[8,256], index: 6, kind: output, shape index: {}]
  %s7 = sld [smem:[#allocation0]]
  $region58: #{tpu_custom_call.1} parent=0
    _
  %s9 = ssub.s32 1, %s7
  %s10 = scalar_select 0, %s9, %s7
  $region1: #{tpu_custom_call.1} parent=0
    #allocation2 [shape = 'u8[6144]{0}', space=vmem, size = 0x1800, scoped, tag = 'input window, operand 0, single buffered']
    #allocation3 [shape = 's32[1]{0}', space=sflag, size = 0x4, scoped, tag = 'scoped memory for tpu_custom_call.1']
    #allocation4 [shape = 's32[1]{0}', space=sflag, size = 0x4, scoped, tag = 'scoped memory for tpu_custom_call.1']
    #allocation5 [shape = 'u8[196608]{0}', space=vmem, size = 0x30000, scoped, tag = 'input window, operand 1, single buffered']
    #allocation6 [shape = 's32[1]{0}', space=sflag, size = 0x4, scoped, tag = 'scoped memory for tpu_custom_call.1']
    #allocation7 [shape = 'u8[3072]{0}', space=vmem, size = 0xc00, scoped, tag = 'input window, operand 2, single buffered']
    #allocation8 [shape = 'u8[4096]{0}', space=vmem, size = 0x1000, scoped, tag = 'input window, operand 3, single buffered']
    #allocation9 [shape = 's32[1]{0}', space=sflag, size = 0x4, scoped, tag = 'scoped memory for tpu_custom_call.1']
    #allocation10 [shape = 'u8[4096]{0}', space=vmem, size = 0x1000, scoped, tag = 'input window, operand 4, single buffered']
    #allocation11 [shape = 'u8[8192]{0}', space=vmem, size = 0x2000, scoped, tag = 'input window, operand 5, single buffered']
    #allocation12 [shape = 's32[1]{0}', space=sflag, size = 0x4, scoped, tag = 'scoped memory for tpu_custom_call.1']
    #allocation13 [shape = 'u8[8192]{0}', space=vmem, size = 0x2000, scoped, tag = 'output window, operand 0, single buffered']
    %11 = vsyncpa [#allocation3], 0
    %12 = vsyncpa [#allocation6], 0
    %13 = vsyncpa [#allocation9], 0
    %14 = vsyncpa [#allocation12], 0
    %15 = vsyncpa [#allocation4], 0
    // Predicated region
    $region2: #{tpu_custom_call.1} parent=1 // pred_check
      _
    $region3: #{tpu_custom_call.1} parent=1 // pred_check_branch
      %17 = sbr.rel (0) target = $region5
    $region4: #{tpu_custom_call.1} parent=1 // pred_region
      %s19 = ssub.s32 192, 192
      %20 = vsyncadd [#allocation3], %s19
      %s21 = sshll.u32 [#allocation2], 4
      %s22 = int_to_ptr.vmem [resolvable:$true] %s21
      %27 = dma.hbm_to_vmem [thread:$0]  %s0, 192, %s22, [#allocation3], 64, 64, 4
    $region5: #{tpu_custom_call.1} parent=1 // pred_fallthru
      _
    // Predicated region
    $region6: #{tpu_custom_call.1} parent=1 // pred_check
      _
    $region7: #{tpu_custom_call.1} parent=1 // pred_check_branch
      %29 = sbr.rel (0) target = $region9
    $region8: #{tpu_custom_call.1} parent=1 // pred_region
      %s31 = ssub.s32 6144, 6144
      %32 = vsyncadd [#allocation6], %s31
      %s33 = sshll.u32 [#allocation5], 4
      %s34 = int_to_ptr.vmem [resolvable:$true] %s33
      %39 = dma.hbm_to_vmem [thread:$0]  %s1, 6144, %s34, [#allocation6], 128, 128, 8
    $region9: #{tpu_custom_call.1} parent=1 // pred_fallthru
      _
    // Predicated region
    $region10: #{tpu_custom_call.1} parent=1 // pred_check
      _
    $region11: #{tpu_custom_call.1} parent=1 // pred_check_branch
      %41 = sbr.rel (0) target = $region13
    $region12: #{tpu_custom_call.1} parent=1 // pred_region
      %s43 = ssub.s32 96, 96
      %44 = vsyncadd [#allocation6], %s43
      %s45 = sshll.u32 [#allocation7], 4
      %s46 = int_to_ptr.vmem [resolvable:$true] %s45
      %51 = dma.hbm_to_vmem [thread:$0]  %s2, 96, %s46, [#allocation6], 32, 32, 2
    $region13: #{tpu_custom_call.1} parent=1 // pred_fallthru
      _
    // Predicated region
    $region14: #{tpu_custom_call.1} parent=1 // pred_check
      _
    $region15: #{tpu_custom_call.1} parent=1 // pred_check_branch
      %53 = sbr.rel (0) target = $region17
    $region16: #{tpu_custom_call.1} parent=1 // pred_region
      %s55 = ssub.s32 128, 128
      %56 = vsyncadd [#allocation9], %s55
      %s58 = sshll.u32 [#allocation8], 4
      %s59 = int_to_ptr.vmem [resolvable:$true] %s58
      %61 = dma.hbm_to_vmem [thread:$0]  %s3, 128, %s59, [#allocation9]
    $region17: #{tpu_custom_call.1} parent=1 // pred_fallthru
      _
    // Predicated region
    $region18: #{tpu_custom_call.1} parent=1 // pred_check
      _
    $region19: #{tpu_custom_call.1} parent=1 // pred_check_branch
      %63 = sbr.rel (0) target = $region21
    $region20: #{tpu_custom_call.1} parent=1 // pred_region
      %s65 = ssub.s32 128, 128
      %66 = vsyncadd [#allocation9], %s65
      %s68 = sshll.u32 [#allocation10], 4
      %s69 = int_to_ptr.vmem [resolvable:$true] %s68
      %71 = dma.hbm_to_vmem [thread:$0]  %s4, 128, %s69, [#allocation9]
    $region21: #{tpu_custom_call.1} parent=1 // pred_fallthru
      _
    // Predicated region
    $region22: #{tpu_custom_call.1} parent=1 // pred_check
      _
    $region23: #{tpu_custom_call.1} parent=1 // pred_check_branch
      %73 = sbr.rel (0) target = $region25
    $region24: #{tpu_custom_call.1} parent=1 // pred_region
      %s75 = ssub.s32 256, 256
      %76 = vsyncadd [#allocation12], %s75
      %s78 = sshll.u32 [#allocation11], 4
      %s79 = int_to_ptr.vmem [resolvable:$true] %s78
      %81 = dma.hbm_to_vmem [thread:$0]  %s5, 256, %s79, [#allocation12]
    $region25: #{tpu_custom_call.1} parent=1 // pred_fallthru
      _
    // Predicated region
    $region26: #{tpu_custom_call.1} parent=1 // pred_check
      _
    $region27: #{tpu_custom_call.1} parent=1 // pred_check_branch
      %83 = sbr.rel (0) target = $region29
    $region28: #{tpu_custom_call.1} parent=1 // pred_region
      %84 = dma.done [#allocation3], 192
    $region29: #{tpu_custom_call.1} parent=1 // pred_fallthru
      _
    // Predicated region
    $region30: #{tpu_custom_call.1} parent=1 // pred_check
      _
    $region31: #{tpu_custom_call.1} parent=1 // pred_check_branch
      %86 = sbr.rel (0) target = $region33
    $region32: #{tpu_custom_call.1} parent=1 // pred_region
      %87 = dma.done [#allocation6], 6144
    $region33: #{tpu_custom_call.1} parent=1 // pred_fallthru
      _
    // Predicated region
    $region34: #{tpu_custom_call.1} parent=1 // pred_check
      _
    $region35: #{tpu_custom_call.1} parent=1 // pred_check_branch
      %89 = sbr.rel (0) target = $region37
    $region36: #{tpu_custom_call.1} parent=1 // pred_region
      %90 = dma.done [#allocation6], 96
    $region37: #{tpu_custom_call.1} parent=1 // pred_fallthru
      _
    // Predicated region
    $region38: #{tpu_custom_call.1} parent=1 // pred_check
      _
    $region39: #{tpu_custom_call.1} parent=1 // pred_check_branch
      %92 = sbr.rel (0) target = $region41
    $region40: #{tpu_custom_call.1} parent=1 // pred_region
      %93 = dma.done [#allocation9], 128
    $region41: #{tpu_custom_call.1} parent=1 // pred_fallthru
      _
    // Predicated region
    $region42: #{tpu_custom_call.1} parent=1 // pred_check
      _
    $region43: #{tpu_custom_call.1} parent=1 // pred_check_branch
      %95 = sbr.rel (0) target = $region45
    $region44: #{tpu_custom_call.1} parent=1 // pred_region
      %96 = dma.done [#allocation9], 128
    $region45: #{tpu_custom_call.1} parent=1 // pred_fallthru
      _
    // Predicated region
    $region46: #{tpu_custom_call.1} parent=1 // pred_check
      _
    $region47: #{tpu_custom_call.1} parent=1 // pred_check_branch
      %98 = sbr.rel (0) target = $region49
    $region48: #{tpu_custom_call.1} parent=1 // pred_region
      %99 = dma.done [#allocation12], 256
    $region49: #{tpu_custom_call.1} parent=1 // pred_fallthru
      _
    %v101 = vld [vmem:[#allocation10] sm:$0xff]
    %v102 = vld [vmem:[#allocation8] sm:$0xff]
    %v103 = vmul.f32 %v101, %v102
    %vm104 = vcmask 23552
    %v105 = vsel %vm104, %v103, 0.0
    %106 = vadd.xlane.f32.xlu0 %v105
    %v107 = vpop.xlane.xlu0 %106
    %vm108 = vcmp.gt.f32.partialorder %v107, 0.0
    %v109 = vsel %vm108, %v107, 1.0
    %v110 = vrcp.pop %v109
    %v111 = vmul.f32 %v103, %v110
    %v112 = vadd.f32 %v111, 0.0
    %114 = vrot.lane.b32.xlu0 %v111, 127
    %v115 = vpop.permute.xlu0 %114
    %v117 = vadd.f32 %v112, %v115
    %v118 = vld [vmem:[#allocation11] sm:$0xff]
    %v119 = vld [vmem:[#allocation11 + $0x8] sm:$0xff]
    %v120 = vld [vmem:[#allocation2] sm:$0xf]
    %v121 = vld [vmem:[#allocation5] sm:$0xff]
    %v122 = vld [vmem:[#allocation5 + $0x8] sm:$0xff]
    %v123 = vld [vmem:[#allocation5 + $0x10] sm:$0xff]
    %v124 = vld [vmem:[#allocation5 + $0x18] sm:$0xff]
    %v125 = vld [vmem:[#allocation5 + $0x20] sm:$0xff]
    %v126 = vld [vmem:[#allocation5 + $0x28] sm:$0xff]
    %v127 = vld [vmem:[#allocation5 + $0x30] sm:$0xff]
    %v128 = vld [vmem:[#allocation5 + $0x38] sm:$0xff]
    %v129 = vld [vmem:[#allocation5 + $0x40] sm:$0xff]
    %v130 = vld [vmem:[#allocation5 + $0x48] sm:$0xff]
    %v131 = vld [vmem:[#allocation5 + $0x50] sm:$0xff]
    %v132 = vld [vmem:[#allocation5 + $0x58] sm:$0xff]
    %v133 = vld [vmem:[#allocation5 + $0x60] sm:$0xff]
    %v134 = vld [vmem:[#allocation5 + $0x68] sm:$0xff]
    %v135 = vld [vmem:[#allocation5 + $0x70] sm:$0xff]
    %v136 = vld [vmem:[#allocation5 + $0x78] sm:$0xff]
    %v137 = vld [vmem:[#allocation7] sm:$0x3]
    %v139 = vlaneseq
    %v140 = vshrl.u32 %v139, 7
    %v141 = vsub.s32 0, %v140
    %v142 = vrot.slane %v137, %v141
    %v143 = vlaneseq
    %v144 = vshrl.u32 %v143, 7
    %v145 = vsub.s32 1, %v144
    %v146 = vrot.slane %v137, %v145
    %v165 = vunpack.c.l.b16 %v121
    %v166 = vunpack.c.h.b16 %v121
    %v167 = vunpack.c.l.b16 %v122
    %v168 = vunpack.c.h.b16 %v122
    %v169 = vunpack.c.l.b16 %v123
    %v170 = vunpack.c.h.b16 %v123
    %v171 = vunpack.c.l.b16 %v124
    %v172 = vunpack.c.h.b16 %v124
    %v173 = vunpack.c.l.b16 %v125
    %v174 = vunpack.c.h.b16 %v125
    %v175 = vunpack.c.l.b16 %v126
    %v176 = vunpack.c.h.b16 %v126
    %v177 = vunpack.c.l.b16 %v127
    %v178 = vunpack.c.h.b16 %v127
    %v179 = vunpack.c.l.b16 %v128
    %v180 = vunpack.c.h.b16 %v128
    %v181 = vunpack.c.l.b16 %v129
    %v182 = vunpack.c.h.b16 %v129
    %v183 = vunpack.c.l.b16 %v130
    %v184 = vunpack.c.h.b16 %v130
    %v185 = vunpack.c.l.b16 %v131
    %v186 = vunpack.c.h.b16 %v131
    %v187 = vunpack.c.l.b16 %v132
    %v188 = vunpack.c.h.b16 %v132
    %v189 = vunpack.c.l.b16 %v133
    %v190 = vunpack.c.h.b16 %v133
    %v191 = vunpack.c.l.b16 %v134
    %v192 = vunpack.c.h.b16 %v134
    %v193 = vunpack.c.l.b16 %v135
    %v194 = vunpack.c.h.b16 %v135
    %v195 = vunpack.c.l.b16 %v136
    %v196 = vunpack.c.h.b16 %v136
    %v197 = vpack.c.b16 %v167, %v165
    %v198 = vpack.c.b16 %v168, %v166
    %v199 = vpack.c.b16 %v171, %v169
    %v200 = vpack.c.b16 %v172, %v170
    %v201 = vpack.c.b16 %v175, %v173
    %v202 = vpack.c.b16 %v176, %v174
    %v203 = vpack.c.b16 %v179, %v177
    %v204 = vpack.c.b16 %v180, %v178
    %v205 = vpack.c.b16 %v183, %v181
    %v206 = vpack.c.b16 %v184, %v182
    %v207 = vpack.c.b16 %v187, %v185
    %v208 = vpack.c.b16 %v188, %v186
    %v209 = vpack.c.b16 %v191, %v189
    %v210 = vpack.c.b16 %v192, %v190
    %v211 = vpack.c.b16 %v195, %v193
    %v212 = vpack.c.b16 %v196, %v194
    %229 = vmatprep.subr.bf16.mxu0 %v198
    %230 = vmatpush1.bf16.msra.mxu0 %v197
    %231 = vmatprep.subr.bf16.mxu0 %v200
    %232 = vmatpush1.bf16.msra.mxu0 %v199
    %233 = vmatprep.subr.bf16.mxu0 %v202
    %234 = vmatpush1.bf16.msra.mxu0 %v201
    %235 = vmatprep.subr.bf16.mxu0 %v204
    %236 = vmatpush1.bf16.msra.mxu0 %v203
    %237 = vmatprep.subr.bf16.mxu0 %v206
    %238 = vmatpush1.bf16.msra.mxu0 %v205
    %239 = vmatprep.subr.bf16.mxu0 %v208
    %240 = vmatpush1.bf16.msra.mxu0 %v207
    %241 = vmatprep.subr.bf16.mxu0 %v210
    %242 = vmatpush1.bf16.msra.mxu0 %v209
    %243 = vmatprep.subr.bf16.mxu0 %v212
    %244 = vmatpush1.bf16.msra.mxu0 %v211
    %245 = vmatprep.subr.bf16.mxu0 0
    %246 = vmatpush1.bf16.msra.mxu0 0
    %247 = vmatprep.subr.bf16.mxu0 0
    %248 = vmatpush1.bf16.msra.mxu0 0
    %249 = vmatprep.subr.bf16.mxu0 0
    %250 = vmatpush1.bf16.msra.mxu0 0
    %251 = vmatprep.subr.bf16.mxu0 0
    %252 = vmatpush1.bf16.msra.mxu0 0
    %253 = vmatprep.subr.bf16.mxu0 0
    %254 = vmatpush1.bf16.msra.mxu0 0
    %255 = vmatprep.subr.bf16.mxu0 0
    %256 = vmatpush1.bf16.msra.mxu0 0
    %257 = vmatprep.subr.bf16.mxu0 0
    %258 = vmatpush1.bf16.msra.mxu0 0
    %259 = vmatprep.subr.bf16.mxu0 0
    %260 = vmatpush1.bf16.msra.mxu0 0
    %261 = vmatprep.mubr.bf16.mxu0 0
    %262 = vmatmul.mubr.bf16.gmra.mrb[0].mxu0 %v120
    %v263 = vpop.f32.mrb[0].mxu0
    %v264 = vadd.f32 %v142, %v263
    %v265 = vpop.f32.mrb[0].mxu0
    %v266 = vadd.f32 %v146, %v265
    %v267 = vpop.f32.mrb[0].mxu0
    %v268 = vpop.f32.mrb[0].mxu0
    %269 = vdwg.mxu0
    %v270 = vmax.f32 %v264, 0.0
    %v271 = vmax.f32 %v266, 0.0
    %s272 = scalar_lea.vmem [#allocation2], 4
    %v273 = vld [vmem:[%s272] sm:$0xf]
    %s274 = scalar_lea.vmem [#allocation5], 128
    %v275 = vld [vmem:[%s274] sm:$0xff]
    %v276 = vld [vmem:[%s274 + $0x8] sm:$0xff]
    %v277 = vld [vmem:[%s274 + $0x10] sm:$0xff]
    %v278 = vld [vmem:[%s274 + $0x18] sm:$0xff]
    %v279 = vld [vmem:[%s274 + $0x20] sm:$0xff]
    %v280 = vld [vmem:[%s274 + $0x28] sm:$0xff]
    %v281 = vld [vmem:[%s274 + $0x30] sm:$0xff]
    %v282 = vld [vmem:[%s274 + $0x38] sm:$0xff]
    %v283 = vld [vmem:[%s274 + $0x40] sm:$0xff]
    %v284 = vld [vmem:[%s274 + $0x48] sm:$0xff]
    %v285 = vld [vmem:[%s274 + $0x50] sm:$0xff]
    %v286 = vld [vmem:[%s274 + $0x58] sm:$0xff]
    %v287 = vld [vmem:[%s274 + $0x60] sm:$0xff]
    %v288 = vld [vmem:[%s274 + $0x68] sm:$0xff]
    %v289 = vld [vmem:[%s274 + $0x70] sm:$0xff]
    %v290 = vld [vmem:[%s274 + $0x78] sm:$0xff]
    %s291 = scalar_lea.vmem [#allocation7], 2
    %v292 = vld [vmem:[%s291] sm:$0x3]
    %v294 = vlaneseq
    %v295 = vshrl.u32 %v294, 7
    %v296 = vsub.s32 0, %v295
    %v297 = vrot.slane %v292, %v296
    %v298 = vlaneseq
    %v299 = vshrl.u32 %v298, 7
    %v300 = vsub.s32 1, %v299
    %v301 = vrot.slane %v292, %v300
    %v320 = vunpack.c.l.b16 %v275
    %v321 = vunpack.c.h.b16 %v275
    %v322 = vunpack.c.l.b16 %v276
    %v323 = vunpack.c.h.b16 %v276
    %v324 = vunpack.c.l.b16 %v277
    %v325 = vunpack.c.h.b16 %v277
    %v326 = vunpack.c.l.b16 %v278
    %v327 = vunpack.c.h.b16 %v278
    %v328 = vunpack.c.l.b16 %v279
    %v329 = vunpack.c.h.b16 %v279
    %v330 = vunpack.c.l.b16 %v280
    %v331 = vunpack.c.h.b16 %v280
    %v332 = vunpack.c.l.b16 %v281
    %v333 = vunpack.c.h.b16 %v281
    %v334 = vunpack.c.l.b16 %v282
    %v335 = vunpack.c.h.b16 %v282
    %v336 = vunpack.c.l.b16 %v283
    %v337 = vunpack.c.h.b16 %v283
    %v338 = vunpack.c.l.b16 %v284
    %v339 = vunpack.c.h.b16 %v284
    %v340 = vunpack.c.l.b16 %v285
    %v341 = vunpack.c.h.b16 %v285
    %v342 = vunpack.c.l.b16 %v286
    %v343 = vunpack.c.h.b16 %v286
    %v344 = vunpack.c.l.b16 %v287
    %v345 = vunpack.c.h.b16 %v287
    %v346 = vunpack.c.l.b16 %v288
    %v347 = vunpack.c.h.b16 %v288
    %v348 = vunpack.c.l.b16 %v289
    %v349 = vunpack.c.h.b16 %v289
    %v350 = vunpack.c.l.b16 %v290
    %v351 = vunpack.c.h.b16 %v290
    %v352 = vpack.c.b16 %v322, %v320
    %v353 = vpack.c.b16 %v323, %v321
    %v354 = vpack.c.b16 %v326, %v324
    %v355 = vpack.c.b16 %v327, %v325
    %v356 = vpack.c.b16 %v330, %v328
    %v357 = vpack.c.b16 %v331, %v329
    %v358 = vpack.c.b16 %v334, %v332
    %v359 = vpack.c.b16 %v335, %v333
    %v360 = vpack.c.b16 %v338, %v336
    %v361 = vpack.c.b16 %v339, %v337
    %v362 = vpack.c.b16 %v342, %v340
    %v363 = vpack.c.b16 %v343, %v341
    %v364 = vpack.c.b16 %v346, %v344
    %v365 = vpack.c.b16 %v347, %v345
    %v366 = vpack.c.b16 %v350, %v348
    %v367 = vpack.c.b16 %v351, %v349
    %384 = vmatprep.subr.bf16.mxu0 %v353
    %385 = vmatpush1.bf16.msra.mxu0 %v352
    %386 = vmatprep.subr.bf16.mxu0 %v355
    %387 = vmatpush1.bf16.msra.mxu0 %v354
    %388 = vmatprep.subr.bf16.mxu0 %v357
    %389 = vmatpush1.bf16.msra.mxu0 %v356
    %390 = vmatprep.subr.bf16.mxu0 %v359
    %391 = vmatpush1.bf16.msra.mxu0 %v358
    %392 = vmatprep.subr.bf16.mxu0 %v361
    %393 = vmatpush1.bf16.msra.mxu0 %v360
    %394 = vmatprep.subr.bf16.mxu0 %v363
    %395 = vmatpush1.bf16.msra.mxu0 %v362
    %396 = vmatprep.subr.bf16.mxu0 %v365
    %397 = vmatpush1.bf16.msra.mxu0 %v364
    %398 = vmatprep.subr.bf16.mxu0 %v367
    %399 = vmatpush1.bf16.msra.mxu0 %v366
    %400 = vmatprep.subr.bf16.mxu0 0
    %401 = vmatpush1.bf16.msra.mxu0 0
    %402 = vmatprep.subr.bf16.mxu0 0
    %403 = vmatpush1.bf16.msra.mxu0 0
    %404 = vmatprep.subr.bf16.mxu0 0
    %405 = vmatpush1.bf16.msra.mxu0 0
    %406 = vmatprep.subr.bf16.mxu0 0
    %407 = vmatpush1.bf16.msra.mxu0 0
    %408 = vmatprep.subr.bf16.mxu0 0
    %409 = vmatpush1.bf16.msra.mxu0 0
    %410 = vmatprep.subr.bf16.mxu0 0
    %411 = vmatpush1.bf16.msra.mxu0 0
    %412 = vmatprep.subr.bf16.mxu0 0
    %413 = vmatpush1.bf16.msra.mxu0 0
    %414 = vmatprep.subr.bf16.mxu0 0
    %415 = vmatpush1.bf16.msra.mxu0 0
    %416 = vmatprep.mubr.bf16.mxu0 0
    %417 = vmatmul.mubr.bf16.gmra.mrb[0].mxu0 %v273
    %v418 = vpop.f32.mrb[0].mxu0
    %v419 = vadd.f32 %v297, %v418
    %v420 = vpop.f32.mrb[0].mxu0
    %v421 = vadd.f32 %v301, %v420
    %v422 = vpop.f32.mrb[0].mxu0
    %v423 = vpop.f32.mrb[0].mxu0
    %424 = vdwg.mxu0
    %v425 = vmax.f32 %v419, 0.0
    %v426 = vmax.f32 %v421, 0.0
    %428 = vset.pattern.permute.xlu0 0
    %429 = vperm.xlu0 %428, %v112
    %v430 = vpop.permute.xlu0 %429
    %vm432 = vcmp.ge.f32.partialorder %v118, %v430
    %vm433 = vcmp.ge.f32.partialorder %v119, %v430
    %v434 = vsel %vm432, %v425, %v270
    %v435 = vsel %vm433, %v426, %v271
    %s436 = scalar_lea.vmem [#allocation2], 8
    %v437 = vld [vmem:[%s436] sm:$0xf]
    %s438 = scalar_lea.vmem [#allocation5], 256
    %v439 = vld [vmem:[%s438] sm:$0xff]
    %v440 = vld [vmem:[%s438 + $0x8] sm:$0xff]
    %v441 = vld [vmem:[%s438 + $0x10] sm:$0xff]
    %v442 = vld [vmem:[%s438 + $0x18] sm:$0xff]
    %v443 = vld [vmem:[%s438 + $0x20] sm:$0xff]
    %v444 = vld [vmem:[%s438 + $0x28] sm:$0xff]
    %v445 = vld [vmem:[%s438 + $0x30] sm:$0xff]
    %v446 = vld [vmem:[%s438 + $0x38] sm:$0xff]
    %v447 = vld [vmem:[%s438 + $0x40] sm:$0xff]
    %v448 = vld [vmem:[%s438 + $0x48] sm:$0xff]
    %v449 = vld [vmem:[%s438 + $0x50] sm:$0xff]
    %v450 = vld [vmem:[%s438 + $0x58] sm:$0xff]
    %v451 = vld [vmem:[%s438 + $0x60] sm:$0xff]
    %v452 = vld [vmem:[%s438 + $0x68] sm:$0xff]
    %v453 = vld [vmem:[%s438 + $0x70] sm:$0xff]
    %v454 = vld [vmem:[%s438 + $0x78] sm:$0xff]
    %s455 = scalar_lea.vmem [#allocation7], 4
    %v456 = vld [vmem:[%s455] sm:$0x3]
    %v458 = vlaneseq
    %v459 = vshrl.u32 %v458, 7
    %v460 = vsub.s32 0, %v459
    %v461 = vrot.slane %v456, %v460
    %v462 = vlaneseq
    %v463 = vshrl.u32 %v462, 7
    %v464 = vsub.s32 1, %v463
    %v465 = vrot.slane %v456, %v464
    %v484 = vunpack.c.l.b16 %v439
    %v485 = vunpack.c.h.b16 %v439
    %v486 = vunpack.c.l.b16 %v440
    %v487 = vunpack.c.h.b16 %v440
    %v488 = vunpack.c.l.b16 %v441
    %v489 = vunpack.c.h.b16 %v441
    %v490 = vunpack.c.l.b16 %v442
    %v491 = vunpack.c.h.b16 %v442
    %v492 = vunpack.c.l.b16 %v443
    %v493 = vunpack.c.h.b16 %v443
    %v494 = vunpack.c.l.b16 %v444
    %v495 = vunpack.c.h.b16 %v444
    %v496 = vunpack.c.l.b16 %v445
    %v497 = vunpack.c.h.b16 %v445
    %v498 = vunpack.c.l.b16 %v446
    %v499 = vunpack.c.h.b16 %v446
    %v500 = vunpack.c.l.b16 %v447
    %v501 = vunpack.c.h.b16 %v447
    %v502 = vunpack.c.l.b16 %v448
    %v503 = vunpack.c.h.b16 %v448
    %v504 = vunpack.c.l.b16 %v449
    %v505 = vunpack.c.h.b16 %v449
    %v506 = vunpack.c.l.b16 %v450
    %v507 = vunpack.c.h.b16 %v450
    %v508 = vunpack.c.l.b16 %v451
    %v509 = vunpack.c.h.b16 %v451
    %v510 = vunpack.c.l.b16 %v452
    %v511 = vunpack.c.h.b16 %v452
    %v512 = vunpack.c.l.b16 %v453
    %v513 = vunpack.c.h.b16 %v453
    %v514 = vunpack.c.l.b16 %v454
    %v515 = vunpack.c.h.b16 %v454
    %v516 = vpack.c.b16 %v486, %v484
    %v517 = vpack.c.b16 %v487, %v485
    %v518 = vpack.c.b16 %v490, %v488
    %v519 = vpack.c.b16 %v491, %v489
    %v520 = vpack.c.b16 %v494, %v492
    %v521 = vpack.c.b16 %v495, %v493
    %v522 = vpack.c.b16 %v498, %v496
    %v523 = vpack.c.b16 %v499, %v497
    %v524 = vpack.c.b16 %v502, %v500
    %v525 = vpack.c.b16 %v503, %v501
    %v526 = vpack.c.b16 %v506, %v504
    %v527 = vpack.c.b16 %v507, %v505
    %v528 = vpack.c.b16 %v510, %v508
    %v529 = vpack.c.b16 %v511, %v509
    %v530 = vpack.c.b16 %v514, %v512
    %v531 = vpack.c.b16 %v515, %v513
    %548 = vmatprep.subr.bf16.mxu0 %v517
    %549 = vmatpush1.bf16.msra.mxu0 %v516
    %550 = vmatprep.subr.bf16.mxu0 %v519
    %551 = vmatpush1.bf16.msra.mxu0 %v518
    %552 = vmatprep.subr.bf16.mxu0 %v521
    %553 = vmatpush1.bf16.msra.mxu0 %v520
    %554 = vmatprep.subr.bf16.mxu0 %v523
    %555 = vmatpush1.bf16.msra.mxu0 %v522
    %556 = vmatprep.subr.bf16.mxu0 %v525
    %557 = vmatpush1.bf16.msra.mxu0 %v524
    %558 = vmatprep.subr.bf16.mxu0 %v527
    %559 = vmatpush1.bf16.msra.mxu0 %v526
    %560 = vmatprep.subr.bf16.mxu0 %v529
    %561 = vmatpush1.bf16.msra.mxu0 %v528
    %562 = vmatprep.subr.bf16.mxu0 %v531
    %563 = vmatpush1.bf16.msra.mxu0 %v530
    %564 = vmatprep.subr.bf16.mxu0 0
    %565 = vmatpush1.bf16.msra.mxu0 0
    %566 = vmatprep.subr.bf16.mxu0 0
    %567 = vmatpush1.bf16.msra.mxu0 0
    %568 = vmatprep.subr.bf16.mxu0 0
    %569 = vmatpush1.bf16.msra.mxu0 0
    %570 = vmatprep.subr.bf16.mxu0 0
    %571 = vmatpush1.bf16.msra.mxu0 0
    %572 = vmatprep.subr.bf16.mxu0 0
    %573 = vmatpush1.bf16.msra.mxu0 0
    %574 = vmatprep.subr.bf16.mxu0 0
    %575 = vmatpush1.bf16.msra.mxu0 0
    %576 = vmatprep.subr.bf16.mxu0 0
    %577 = vmatpush1.bf16.msra.mxu0 0
    %578 = vmatprep.subr.bf16.mxu0 0
    %579 = vmatpush1.bf16.msra.mxu0 0
    %580 = vmatprep.mubr.bf16.mxu0 0
    %581 = vmatmul.mubr.bf16.gmra.mrb[0].mxu0 %v437
    %v582 = vpop.f32.mrb[0].mxu0
    %v583 = vadd.f32 %v461, %v582
    %v584 = vpop.f32.mrb[0].mxu0
    %v585 = vadd.f32 %v465, %v584
    %v586 = vpop.f32.mrb[0].mxu0
    %v587 = vpop.f32.mrb[0].mxu0
    %588 = vdwg.mxu0
    %v589 = vmax.f32 %v583, 0.0
    %v590 = vmax.f32 %v585, 0.0
    %592 = vset.pattern.permute.xlu0 0
    %593 = vperm.xlu0 %592, %v117
    %v594 = vpop.permute.xlu0 %593
    %vm596 = vcmp.ge.f32.partialorder %v118, %v594
    %vm597 = vcmp.ge.f32.partialorder %v119, %v594
    %v598 = vsel %vm596, %v589, %v434
    %v599 = vsel %vm597, %v590, %v435
    %600 = vst [vmem:[#allocation13] sm:$0xff] %v598
    %601 = vst [vmem:[#allocation13 + $0x8] sm:$0xff] %v599
    // Predicated region
    $region50: #{tpu_custom_call.1} parent=1 // pred_check
      _
    $region51: #{tpu_custom_call.1} parent=1 // pred_check_branch
      %603 = sbr.rel (0) target = $region53
    $region52: #{tpu_custom_call.1} parent=1 // pred_region
      %s605 = ssub.s32 256, 256
      %606 = vsyncadd [#allocation4], %s605
      %s608 = sshll.u32 [#allocation13], 4
      %s609 = int_to_ptr.vmem [resolvable:$true] %s608
      %611 = dma.vmem_to_hbm [thread:$0]  %s609, 256, %s6, [#allocation4]
    $region53: #{tpu_custom_call.1} parent=1 // pred_fallthru
      _
    // Predicated region
    $region54: #{tpu_custom_call.1} parent=1 // pred_check
      _
    $region55: #{tpu_custom_call.1} parent=1 // pred_check_branch
      %613 = sbr.rel (0) target = $region57
    $region56: #{tpu_custom_call.1} parent=1 // pred_region
      %614 = dma.done [#allocation4], 256
    $region57: #{tpu_custom_call.1} parent=1 // pred_fallthru
      _
    %615 = vsyncpa [#allocation3], 1
    %616 = vsyncpa [#allocation6], 1
    %617 = vsyncpa [#allocation9], 1
    %618 = vsyncpa [#allocation12], 1
    %619 = vsyncpa [#allocation4], 1

</llo_original>
